<compile_context>
chip_gen: v5e
topology: v5e:2x2
jax: 0.10.0
libtpu: 0.0.40
codegen_flags: <defaults>
</compile_context>

<pallas_src>
import jax
import jax.numpy as jnp
import numpy as np
from jax.experimental import pallas as pl
from jax.experimental.pallas import tpu as pltpu


TOKEN_BLOCK = 128  # tokens gathered per grid step (sublane-aligned, amortizes
                   # per-grid-step overhead; good default on v5e/v6e/v7x)


def _gather_kernel(ids_ref, table_hbm, out_ref, gbuf, sem):
    """Gather TOKEN_BLOCK embedding rows from the HBM table via async DMA.

    ids_ref   : (n_pad,)               int32  SMEM (scalar-prefetched)
    table_hbm : (vocab, d_model)       f32    HBM ref (memory_space=pl.ANY)
    out_ref   : (TOKEN_BLOCK, d_model) f32    VMEM output block
    gbuf      : (TOKEN_BLOCK, d_model) f32    VMEM gather scratch
    sem       : scalar DMA semaphore
    """
    base = pl.program_id(0) * TOKEN_BLOCK

    # Issue all row copies (HBM -> VMEM scratch) so they overlap each other...
    @pl.loop(0, TOKEN_BLOCK)
    def _issue(t):
        tok = ids_ref[base + t]                      # scalar read from SMEM
        pltpu.make_async_copy(
            table_hbm.at[pl.ds(tok, 1), :],          # one (1, d_model) row
            gbuf.at[pl.ds(t, 1), :],
            sem,
        ).start()

    # ... then wait for all of them (same-sized copies on one semaphore).
    @pl.loop(0, TOKEN_BLOCK)
    def _wait(t):
        pltpu.make_async_copy(
            table_hbm.at[pl.ds(0, 1), :],
            gbuf.at[pl.ds(0, 1), :],
            sem,
        ).wait()

    # Single lane-dense store of the whole token block.
    out_ref[...] = gbuf[...]


def bnode_embedding(x, table, *, dropout=0.0, training=False):
    """Forward pass of BnodeEmbedding.

    x     : integer index array of any shape (...,)
    table : (vocab, d_model) f32 pretrained embedding matrix
    Returns (..., d_model).
    """
    # Dropout2d / Dropout are identity outside training (and when dropout == 0).
    # TODO(synk): stochastic dropout path (training and p > 0) not implemented.
    del dropout, training

    orig_shape = x.shape
    vocab, d_model = table.shape

    ids = x.reshape(-1).astype(jnp.int32)
    # Clamp so padded / out-of-range ids can never drive an OOB HBM DMA.
    # (torch.nn.Embedding would raise on OOB; here we clamp defensively.)
    ids = jnp.clip(ids, 0, vocab - 1)

    n = ids.shape[0]
    num_blocks = pl.cdiv(n, TOKEN_BLOCK)
    n_pad = num_blocks * TOKEN_BLOCK
    if n_pad != n:
        ids = jnp.pad(ids, (0, n_pad - n))

    grid_spec = pltpu.PrefetchScalarGridSpec(
        num_scalar_prefetch=1,            # ids -> SMEM before the grid runs
        grid=(num_blocks,),
        in_specs=[
            # Embedding table stays in HBM; rows are DMA-gathered on demand,
            # so VMEM use is independent of vocabulary size.
            pl.BlockSpec(memory_space=pl.ANY),
        ],
        out_specs=pl.BlockSpec((TOKEN_BLOCK, d_model),
                               lambda i, ids_ref: (i, 0)),
        scratch_shapes=[
            pltpu.VMEM((TOKEN_BLOCK, d_model), table.dtype),
            pltpu.SemaphoreType.DMA(()),
        ],
    )

    out = pl.pallas_call(
        _gather_kernel,
        out_shape=jax.ShapeDtypeStruct((n_pad, d_model), table.dtype),
        grid_spec=grid_spec,
        compiler_params=pltpu.CompilerParams(
            dimension_semantics=("parallel",)),
    )(ids, table)

    out = out[:n]
    return out.reshape(*orig_shape, d_model)


# ------------------------------- demo / check ---------------------------------
if __name__ == "__main__":
    batch, seq = 2, 8
    vocab, d_model = 32, 128
    dropout = 0.0

    key = jax.random.PRNGKey(0)
    k_emb, k_idx = jax.random.split(key)
    embedding = jax.random.normal(k_emb, (vocab, d_model), jnp.float32)
    x = jax.random.randint(k_idx, (batch, seq), 0, vocab, dtype=jnp.int32)

    out = bnode_embedding(x, embedding, dropout=dropout, training=False)
    out = jax.block_until_ready(out)

    # Pure-JAX reference: nn.Embedding lookup; dropout is identity (eval / p=0).
    out_ref = jnp.take(embedding, x, axis=0)
    np.testing.assert_array_equal(np.asarray(out), np.asarray(out_ref))
    assert out.shape == (batch, seq, d_model)

    print("KERNEL_OK")
</pallas_src>

<mosaic_0001>
module attributes {stable_mosaic.version = 11 : i64} {
  func.func @_gather_kernel(%arg0: i32, %arg1: memref<128xi32, #tpu.memory_space<smem>>, %arg2: memref<32x128xf32, #tpu.memory_space<any>>, %arg3: memref<128x128xf32, #tpu.memory_space<vmem>>, %arg4: memref<128x128xf32, #tpu.memory_space<vmem>>, %arg5: memref<!tpu.dma_semaphore, #tpu.memory_space<semaphore_mem>>) attributes {dimension_semantics = [#tpu.dimension_semantics<parallel>], iteration_bounds = array<i64: 1>, scalar_prefetch = 1 : i64, scratch_operands = 2 : i64, tpu.core_type = #tpu.core_type<tc>, window_params = [{}, {transform_indices = @transform_1, window_bounds = array<i64: 128, 128>}]} {
    %c128_i32 = arith.constant 128 : i32
    %0 = arith.muli %arg0, %c128_i32 : i32
    %c0_i32 = arith.constant 0 : i32
    %c128_i32_0 = arith.constant 128 : i32
    %1 = arith.addi %c0_i32, %c128_i32_0 : i32
    %c1_i32 = arith.constant 1 : i32
    scf.for %arg6 = %c0_i32 to %1 step %c1_i32  : i32 {
      %c1_i32_8 = arith.constant 1 : i32
      %5 = arith.muli %arg6, %c1_i32_8 : i32
      %c0_i32_9 = arith.constant 0 : i32
      %6 = arith.addi %c0_i32_9, %5 : i32
      %7 = arith.addi %0, %6 : i32
      %8 = arith.index_cast %7 : i32 to index
      %9 = memref.load %arg1[%8] : memref<128xi32, #tpu.memory_space<smem>>
      %c0_i32_10 = arith.constant 0 : i32
      %10 = tpu.memref_slice %arg2[%9, %c0_i32_10] : memref<32x128xf32, #tpu.memory_space<any>> -> memref<1x128xf32, #tpu.memory_space<any>>
      %c0_i32_11 = arith.constant 0 : i32
      %11 = tpu.memref_slice %arg4[%6, %c0_i32_11] : memref<128x128xf32, #tpu.memory_space<vmem>> -> memref<1x128xf32, #tpu.memory_space<vmem>>
      tpu.enqueue_dma source(%10 : memref<1x128xf32, #tpu.memory_space<any>>) target(%11 : memref<1x128xf32, #tpu.memory_space<vmem>>) target_semaphore(%arg5 : memref<!tpu.dma_semaphore, #tpu.memory_space<semaphore_mem>>)
    }
    %c128_i32_1 = arith.constant 128 : i32
    %c0_i32_2 = arith.constant 0 : i32
    %c128_i32_3 = arith.constant 128 : i32
    %2 = arith.addi %c0_i32_2, %c128_i32_3 : i32
    %c1_i32_4 = arith.constant 1 : i32
    scf.for %arg6 = %c0_i32_2 to %2 step %c1_i32_4  : i32 {
      %c0_i32_8 = arith.constant 0 : i32
      %c0_i32_9 = arith.constant 0 : i32
      %5 = tpu.memref_slice %arg2[%c0_i32_8, %c0_i32_9] : memref<32x128xf32, #tpu.memory_space<any>> -> memref<1x128xf32, #tpu.memory_space<any>>
      %c0_i32_10 = arith.constant 0 : i32
      %c0_i32_11 = arith.constant 0 : i32
      %6 = tpu.memref_slice %arg4[%c0_i32_10, %c0_i32_11] : memref<128x128xf32, #tpu.memory_space<vmem>> -> memref<1x128xf32, #tpu.memory_space<vmem>>
      tpu.wait_dma2 semaphore(%arg5 : memref<!tpu.dma_semaphore, #tpu.memory_space<semaphore_mem>>) src(%5 : memref<1x128xf32, #tpu.memory_space<any>>) dst(%6 : memref<1x128xf32, #tpu.memory_space<vmem>>)
    }
    %c0 = arith.constant 0 : index
    %c0_5 = arith.constant 0 : index
    %3 = vector.load %arg4[%c0, %c0_5] : memref<128x128xf32, #tpu.memory_space<vmem>>, vector<128x128xf32>
    %c0_6 = arith.constant 0 : index
    %c0_7 = arith.constant 0 : index
    %4 = vector.load %arg3[%c0_6, %c0_7] : memref<128x128xf32, #tpu.memory_space<vmem>>, vector<128x128xf32>
    tpu.vector_store %arg3[%c0_6, %c0_7], %3 {strides = array<i32>} : memref<128x128xf32, #tpu.memory_space<vmem>>, vector<128x128xf32>,
    return
  }
  func.func @transform_1(%arg0: i32, %arg1: memref<128xi32, #tpu.memory_space<smem>>) -> (i32, i32) {
    %c0_i32 = arith.constant 0 : i32
    %c0_i32_0 = arith.constant 0 : i32
    return %arg0, %c0_i32 : i32, i32
  }
}

</mosaic_0001>

<llo_original>
// kernel: tpu_custom_call.1
$region0: #{tpu_custom_call.1}
  #allocation0 [shape = 'u32[]', space=smem, size = 0x4, offset = 0x4, fixed_abs, tag = 'smem constant byte address 0x4 - core index']
  #allocation1 [shape = 'u32[72,128]{1,0:T(1,128)}', space=vmem, size = 0x9000, scoped, tag = 'internal scratch']
  #allocation2 [shape = 'f32[128,128]{1,0:T(8,128)}', space=vmem, size = 0x10000, scoped, tag = 'scratch operand']
  #allocation3 [shape = 's32[1]{0}', space=sflag, size = 0x4, scoped, tag = 'scratch operand']
  #allocation4 [shape = 's32[1]{0}', space=sflag, size = 0x4, scoped, tag = 'scoped memory for tpu_custom_call.1']
  #allocation5 [shape = 'u8[512]{0}', space=smem, size = 0x200, scoped, tag = 'prefetched SMEM operand 0']
  #allocation8 [shape = 's32[]', space=sflag, size = 0x4, offset = 0, fixed_abs, tag = 'sflag constant byte address 0x0 - dummy sync flag']
  #allocation9 [shape = 's32[]', space=sflag, size = 0x4, offset = 0, fixed_abs, tag = 'sflag constant byte address 0x0 - dummy sync flag']
  #allocation10 [shape = 'u32[]', space=smem, size = 0x4, offset = 0x44, fixed_abs, tag = 'smem constant byte address 0x44 - assertion arg 0']
  #allocation11 [shape = 'u32[]', space=smem, size = 0x4, offset = 0x48, fixed_abs, tag = 'smem constant byte address 0x48 - assertion arg 1']
  %s0 = inlined_call_operand.hbm [shape: s32[128], index: 0, kind: input, shape index: {}]
  %s1 = inlined_call_operand.hbm [shape: f32[32,128], index: 1, kind: input, shape index: {}]
  %s2 = inlined_call_operand.hbm [shape: f32[128,128], index: 2, kind: output, shape index: {}]
  %s3 = sld [smem:[#allocation0]]
  $region28: #{tpu_custom_call.1} parent=0
    _
  %s5 = ssub.s32 1, %s3
  %s6 = scalar_select 0, %s5, %s3
  %s8 = sshll.u32 %s0, 4
  %s9 = int_to_ptr.hbm [resolvable:$true] %s8
  %11 = dma.hbm_to_smem %s9, 16, [#allocation5], [#allocation4]
  %13 = dma.done [#allocation4], 16
  %14 = sfence
  $region1: #{tpu_custom_call.1} parent=0
    #allocation6 [shape = 'u8[65536]{0}', space=vmem, size = 0x10000, scoped, tag = 'output window, operand 0, single buffered']
    #allocation7 [shape = 's32[1]{0}', space=sflag, size = 0x4, scoped, tag = 'scoped memory for tpu_custom_call.1']
    %15 = vsyncpa [#allocation7], 0
    %s16 = smul.u32 0, 128
    loop: start=0, step=1, limit=128
    $region2: #{tpu_custom_call.1} parent=1 // loop_pre_header
      _
    $region3: #{tpu_custom_call.1} parent=1 // loop_header
      %s18 = sphi 0, %s22
      %p19 = scmp.ge.s32.totalorder %s18, 128
    $region4: #{tpu_custom_call.1} parent=1 // loop_header_branch
      %21 = sbr.rel (%p19) target = $region8
    $region5: #{tpu_custom_call.1} parent=1 // loop_body
      %s23 = sadd.s32 %s16, %s18
      %s24 = sld [smem:[#allocation5 + %s23]]
      %s25 = scalar_lea.hbm %s1, %s24
      %s26 = scalar_lea.vmem [#allocation2], %s18
      // Predicated region
      $region9: #{tpu_custom_call.1} parent=5 // pred_check
        _
      $region10: #{tpu_custom_call.1} parent=5 // pred_check_branch
        %28 = sbr.rel target = $region12
      $region11: #{tpu_custom_call.1} parent=5 // pred_region
        %29 = sst [smem:[#allocation10]] [#allocation9]
        %30 = sst [smem:[#allocation11]] [#allocation8]
      $region12: #{tpu_custom_call.1} parent=5 // pred_fallthru
        _
      %32 = shalt.err (0)
      %s34 = sshll.u32 %s25, 4
      %s35 = int_to_ptr.hbm [resolvable:$true] %s34
      %s36 = sshll.u32 %s26, 4
      %s37 = int_to_ptr.vmem [resolvable:$true] %s36
      %39 = dma.hbm_to_vmem [thread:$0]  %s35, 16, %s37, [#allocation3]
    $region6: #{tpu_custom_call.1} parent=1 // loop_footer
      %s22 = sadd.s32 1, %s18
    $region7: #{tpu_custom_call.1} parent=1 // loop_footer_branch
      %17 = sbr.rel target = $region3
    $region8: #{tpu_custom_call.1} parent=1 // loop_exit
      _
    loop: start=0, step=1, limit=128
    $region13: #{tpu_custom_call.1} parent=1 // loop_pre_header
      _
    $region14: #{tpu_custom_call.1} parent=1 // loop_header
      %s41 = sphi 0, %s45
      %p42 = scmp.ge.s32.totalorder %s41, 128
    $region15: #{tpu_custom_call.1} parent=1 // loop_header_branch
      %44 = sbr.rel (%p42) target = $region19
    $region16: #{tpu_custom_call.1} parent=1 // loop_body
      %s46 = smul.u32 1, 1
      %s47 = sshll.u32 %s46, 4
      %48 = dma.done [#allocation3], %s47
    $region17: #{tpu_custom_call.1} parent=1 // loop_footer
      %s45 = sadd.s32 1, %s41
    $region18: #{tpu_custom_call.1} parent=1 // loop_footer_branch
      %40 = sbr.rel target = $region14
    $region19: #{tpu_custom_call.1} parent=1 // loop_exit
      _
    %v49 = vld [vmem:[#allocation2] sm:$0xff]
    %v50 = vld [vmem:[#allocation2 + $0x8] sm:$0xff]
    %v51 = vld [vmem:[#allocation2 + $0x10] sm:$0xff]
    %v52 = vld [vmem:[#allocation2 + $0x18] sm:$0xff]
    %v53 = vld [vmem:[#allocation2 + $0x20] sm:$0xff]
    %v54 = vld [vmem:[#allocation2 + $0x28] sm:$0xff]
    %v55 = vld [vmem:[#allocation2 + $0x30] sm:$0xff]
    %v56 = vld [vmem:[#allocation2 + $0x38] sm:$0xff]
    %v57 = vld [vmem:[#allocation2 + $0x40] sm:$0xff]
    %v58 = vld [vmem:[#allocation2 + $0x48] sm:$0xff]
    %v59 = vld [vmem:[#allocation2 + $0x50] sm:$0xff]
    %v60 = vld [vmem:[#allocation2 + $0x58] sm:$0xff]
    %v61 = vld [vmem:[#allocation2 + $0x60] sm:$0xff]
    %v62 = vld [vmem:[#allocation2 + $0x68] sm:$0xff]
    %v63 = vld [vmem:[#allocation2 + $0x70] sm:$0xff]
    %v64 = vld [vmem:[#allocation2 + $0x78] sm:$0xff]
    %65 = vst [vmem:[#allocation6] sm:$0xff] %v49
    %66 = vst [vmem:[#allocation6 + $0x8] sm:$0xff] %v50
    %67 = vst [vmem:[#allocation6 + $0x10] sm:$0xff] %v51
    %68 = vst [vmem:[#allocation6 + $0x18] sm:$0xff] %v52
    %69 = vst [vmem:[#allocation6 + $0x20] sm:$0xff] %v53
    %70 = vst [vmem:[#allocation6 + $0x28] sm:$0xff] %v54
    %71 = vst [vmem:[#allocation6 + $0x30] sm:$0xff] %v55
    %72 = vst [vmem:[#allocation6 + $0x38] sm:$0xff] %v56
    %73 = vst [vmem:[#allocation6 + $0x40] sm:$0xff] %v57
    %74 = vst [vmem:[#allocation6 + $0x48] sm:$0xff] %v58
    %75 = vst [vmem:[#allocation6 + $0x50] sm:$0xff] %v59
    %76 = vst [vmem:[#allocation6 + $0x58] sm:$0xff] %v60
    %77 = vst [vmem:[#allocation6 + $0x60] sm:$0xff] %v61
    %78 = vst [vmem:[#allocation6 + $0x68] sm:$0xff] %v62
    %79 = vst [vmem:[#allocation6 + $0x70] sm:$0xff] %v63
    %80 = vst [vmem:[#allocation6 + $0x78] sm:$0xff] %v64
    // Predicated region
    $region20: #{tpu_custom_call.1} parent=1 // pred_check
      _
    $region21: #{tpu_custom_call.1} parent=1 // pred_check_branch
      %82 = sbr.rel (0) target = $region23
    $region22: #{tpu_custom_call.1} parent=1 // pred_region
      %84 = vsyncadd [#allocation7], 0
      %s85 = sshll.u32 [#allocation6], 4
      %s86 = int_to_ptr.vmem [resolvable:$true] %s85
      %s87 = sshll.u32 %s2, 4
      %s88 = int_to_ptr.hbm [resolvable:$true] %s87
      %93 = dma.vmem_to_hbm [thread:$0]  %s86, 2048, %s88, [#allocation7], 128, 128, 8
    $region23: #{tpu_custom_call.1} parent=1 // pred_fallthru
      _
    // Predicated region
    $region24: #{tpu_custom_call.1} parent=1 // pred_check
      _
    $region25: #{tpu_custom_call.1} parent=1 // pred_check_branch
      %95 = sbr.rel (0) target = $region27
    $region26: #{tpu_custom_call.1} parent=1 // pred_region
      %97 = dma.done [#allocation7], 2048
    $region27: #{tpu_custom_call.1} parent=1 // pred_fallthru
      _
    %98 = vsyncpa [#allocation7], 1
  %99 = vsyncmov [#allocation3]
  %s100 = vpop.sfrf %99
  %p101 = scmp.eq.s32.totalorder %s100, 0
  %p102 = pneg %p101
  %104 = shalt.err (%p102)

</llo_original>
